<compile_context>
chip_gen: v7x
topology: tpu7x:2x2x1
jax: 0.10.0
libtpu: 0.0.40
codegen_flags: <defaults>
</compile_context>

<pallas_src>
import functools

import jax
import jax.numpy as jnp
from jax import lax
from jax.experimental import pallas as pl
from jax.experimental.pallas import tpu as pltpu

_LANES = 128  # lane-dense output width


def _vmem_spec():
    return pl.BlockSpec(memory_space=pltpu.MemorySpace.VMEM)


# ---------------------------------------------------------------------------
# Fused kernel: T iterations of iteration_mu + classifier head, one launch.
# ---------------------------------------------------------------------------
def _fused_kernel(gflat_ref, adjG_ref, Mu0_ref, sel_ref, mats_ref, vecs_ref,
                  out_ref, *, T):
    n, p = Mu0_ref.shape
    nn = gflat_ref.shape[0] // 4          # n * n
    inv_n = 1.0 / n

    # ---- unpack packed parameter slabs (static slices) ----
    vecs = vecs_ref[...]                  # (12, p)
    w12, b12 = vecs[0:1, :], vecs[1:2, :]         # Linear(1, p) weight / bias
    w4, b4 = vecs[2:3, :], vecs[3:4, :]           # Linear(1, p) weight / bias
    b11, b2, b3 = vecs[4:5, :], vecs[5:6, :], vecs[6:7, :]
    b6, b7 = vecs[7:8, :], vecs[8:9, :]
    dw5a, dw5b = vecs[9:10, :], vecs[10:11, :]    # w5[:,1]-w5[:,0], split in halves
    db5 = vecs[11:12, 0:1]                        # (1, 1)  b5[1]-b5[0]

    mats = mats_ref[...]                  # (5p, p)
    w11 = mats[0 * p:1 * p, :]
    w2 = mats[1 * p:2 * p, :]
    w3 = mats[2 * p:3 * p, :]
    w6 = mats[3 * p:4 * p, :]
    w7 = mats[4 * p:5 * p, :]

    # ---- loop-invariant theta1 / theta34 paths (computed once, 2D + MXU) ----
    # gflat rows (each block is the flattened m = i*n + j vector, broadcast to p lanes):
    #   [0:nn)   E[j, i]      [nn:2nn)  W[j, i]
    #   [2nn:3nn) adj_F[i, j] [3nn:4nn) adj_G[i, j]
    et = gflat_ref[pl.ds(0 * nn, nn), :]
    wt = gflat_ref[pl.ds(1 * nn, nn), :]
    af = gflat_ref[pl.ds(2 * nn, nn), :]
    ag = gflat_ref[pl.ds(3 * nn, nn), :]

    re_ = jnp.maximum(et * w12 + b12, 0.0)     # relu(theta12), (n*n, p)
    rw_ = jnp.maximum(wt * w4 + b4, 0.0)       # relu(theta4),  (n*n, p)

    # block-sum matrix S[i, m] = 1 if i*n <= m < (i+1)*n  -> j-reduction on the MXU
    col = lax.broadcasted_iota(jnp.int32, (n, nn), 1)
    row = lax.broadcasted_iota(jnp.int32, (n, nn), 0)
    S = ((col >= row * n) & (col < (row + 1) * n)).astype(jnp.float32)

    theta11_pre = jnp.dot(S, af * re_, preferred_element_type=jnp.float32) * inv_n
    theta3_pre = jnp.dot(S, ag * rw_, preferred_element_type=jnp.float32) * inv_n
    theta11 = jnp.dot(theta11_pre, w11, preferred_element_type=jnp.float32) + b11
    theta3 = jnp.dot(theta3_pre, w3, preferred_element_type=jnp.float32) + b3
    theta_const = theta11 + theta3             # (n, p), constant over iterations

    adjG = adjG_ref[...]                       # (n, n)

    # ---- T fused message-passing iterations (Mu never leaves the chip) ----
    def body(_, Mu):
        t2 = jnp.dot(Mu, w2, preferred_element_type=jnp.float32) + b2
        theta2 = jnp.dot(adjG, t2, preferred_element_type=jnp.float32) * inv_n
        return jnp.maximum((theta_const + theta2) * (1.0 / 3.0), 0.0)

    Mu = lax.fori_loop(0, T, body, Mu0_ref[...], unroll=True)

    # ---- classifier head (edge gather via selection-matrix matmul) ----
    mu_mean = jnp.sum(Mu, axis=0, keepdims=True) * inv_n                      # (1, p)
    mu_tmp = jnp.dot(sel_ref[...], Mu, preferred_element_type=jnp.float32)    # (bt, p)

    theta6 = jnp.maximum(
        jnp.dot(mu_mean, w6, preferred_element_type=jnp.float32) + b6, 0.0)   # (1, p)
    theta7 = jnp.maximum(
        jnp.dot(mu_tmp, w7, preferred_element_type=jnp.float32) + b7, 0.0)    # (bt, p)

    # softmax(theta5)[:,1] / softmax(theta5)[:,0] == exp(logit1 - logit0)
    c = jnp.sum(theta6 * dw5a, axis=1, keepdims=True) + db5                   # (1, 1)
    diff = jnp.sum(theta7 * dw5b, axis=1, keepdims=True) + c                  # (bt, 1)
    out_ref[...] = jnp.broadcast_to(jnp.exp(diff), out_ref.shape)             # (bt, 128)


# ---------------------------------------------------------------------------
# Parameter init (deterministic, torch.nn.Linear-style uniform init) + packing
# ---------------------------------------------------------------------------
def _init_linear(key, in_f, out_f):
    kw, kb = jax.random.split(key)
    bound = 1.0 / (in_f ** 0.5)
    W = jax.random.uniform(kw, (out_f, in_f), minval=-bound, maxval=bound,
                           dtype=jnp.float32)
    b = jax.random.uniform(kb, (out_f,), minval=-bound, maxval=bound,
                           dtype=jnp.float32)
    return jnp.transpose(W), b.reshape(1, out_f)      # (in, out), (1, out)


def init_params(key, p):
    keys = jax.random.split(key, 8)
    w12t, b12 = _init_linear(keys[0], 1, p)
    w11t, b11 = _init_linear(keys[1], p, p)
    w2t, b2 = _init_linear(keys[2], p, p)
    w4t, b4 = _init_linear(keys[3], 1, p)
    w3t, b3 = _init_linear(keys[4], p, p)
    w6t, b6 = _init_linear(keys[5], p, p)
    w7t, b7 = _init_linear(keys[6], p, p)
    w5t, b5 = _init_linear(keys[7], 2 * p, 2)

    dw5 = w5t[:, 1] - w5t[:, 0]                        # (2p,)
    dw5a = dw5[:p].reshape(1, p)                       # acts on relu(theta6)
    dw5b = dw5[p:].reshape(1, p)                       # acts on relu(theta7)
    db5_row = jnp.full((1, p), b5[0, 1] - b5[0, 0], dtype=jnp.float32)

    vecs = jnp.concatenate(
        [w12t, b12, w4t, b4, b11, b2, b3, b6, b7, dw5a, dw5b, db5_row], axis=0)  # (12, p)
    mats = jnp.concatenate([w11t, w2t, w3t, w6t, w7t], axis=0)                   # (5p, p)
    return {"p": p, "vecs": vecs, "mats": mats}


# ---------------------------------------------------------------------------
# Full forward (mirrors test_Net.forward)
# ---------------------------------------------------------------------------
def test_net_forward(params, E, Mu_in, W, adj_F, adj_G, T, e, n, bt_size, mu_key):
    p = params["p"]
    del Mu_in  # the torch forward discards the passed-in Mu and draws randn(1, n, p);
               # we draw it deterministically from mu_key instead.
    Mu0 = jax.random.normal(mu_key, (n, p), dtype=jnp.float32)

    nn = n * n

    def _bcast(v):  # (n*n,) -> (n*n, p) lane-broadcast, done once in the wrapper
        return jnp.broadcast_to(v.reshape(nn, 1), (nn, p))

    # flattened with m = i*n + j: E[j,i], W[j,i], adj_F[i,j], adj_G[i,j]
    gflat = jnp.concatenate([
        _bcast(jnp.transpose(E).reshape(nn)),
        _bcast(jnp.transpose(W).reshape(nn)),
        _bcast(adj_F.reshape(nn)),
        _bcast(adj_G.reshape(nn)),
    ], axis=0)                                                     # (4*n*n, p)

    # edge gather Mu[e[:,0]], Mu[e[:,1]] expressed as a selection-matrix matmul
    sel = 0.5 * (jax.nn.one_hot(e[:, 0], n, dtype=jnp.float32)
                 + jax.nn.one_hot(e[:, 1], n, dtype=jnp.float32))  # (bt, n)

    kernel = functools.partial(_fused_kernel, T=int(T))
    out = pl.pallas_call(
        kernel,
        out_shape=jax.ShapeDtypeStruct((bt_size, _LANES), jnp.float32),
        in_specs=[_vmem_spec()] * 6,
        out_specs=_vmem_spec(),
        compiler_params=pltpu.CompilerParams(vmem_limit_bytes=32 * 1024 * 1024),
    )(gflat, adj_G, Mu0, sel, params["mats"], params["vecs"])
    return out[:, 0]                                               # (bt,)


if __name__ == "__main__":
    p = 16
    n = 8
    T = 3
    bt_size = 4

    root = jax.random.PRNGKey(0)
    k_params, k_E, k_W, k_F, k_G, k_e, k_mu = jax.random.split(root, 7)

    params = init_params(k_params, p)

    E = jax.random.normal(k_E, (n, n), dtype=jnp.float32)
    W = jax.random.normal(k_W, (n, n), dtype=jnp.float32)
    adj_F = jax.random.bernoulli(k_F, 0.5, (n, n)).astype(jnp.float32)
    adj_G = jax.random.bernoulli(k_G, 0.5, (n, n)).astype(jnp.float32)
    Mu_in = jnp.zeros((1, n, p), dtype=jnp.float32)   # ignored by forward (re-drawn)
    e = jax.random.randint(k_e, (bt_size, 2), 0, n, dtype=jnp.int32)

    out = test_net_forward(params, E, Mu_in, W, adj_F, adj_G, T, e, n, bt_size, k_mu)
    out = jax.block_until_ready(out)
    assert out.shape == (bt_size,) and out.dtype == jnp.float32
    print("KERNEL_OK")
</pallas_src>

<mosaic_0001>
module attributes {stable_mosaic.version = 11 : i64} {
  func.func @_fused_kernel(%arg0: memref<256x16xf32, #tpu.memory_space<vmem>>, %arg1: memref<8x8xf32, #tpu.memory_space<vmem>>, %arg2: memref<8x16xf32, #tpu.memory_space<vmem>>, %arg3: memref<4x8xf32, #tpu.memory_space<vmem>>, %arg4: memref<80x16xf32, #tpu.memory_space<vmem>>, %arg5: memref<12x16xf32, #tpu.memory_space<vmem>>, %arg6: memref<4x128xf32, #tpu.memory_space<vmem>>) attributes {dimension_semantics = [], scalar_prefetch = 0 : i64, scratch_operands = 0 : i64, tpu.core_type = #tpu.core_type<tc>} {
    %c0 = arith.constant 0 : index
    %c0_0 = arith.constant 0 : index
    %0 = vector.load %arg5[%c0, %c0_0] : memref<12x16xf32, #tpu.memory_space<vmem>>, vector<12x16xf32>
    %1 = vector.extract_strided_slice %0 {offsets = [0, 0], sizes = [1, 16], strides = [1, 1]} : vector<12x16xf32> to vector<1x16xf32>
    %2 = vector.extract_strided_slice %0 {offsets = [1, 0], sizes = [1, 16], strides = [1, 1]} : vector<12x16xf32> to vector<1x16xf32>
    %3 = vector.extract_strided_slice %0 {offsets = [2, 0], sizes = [1, 16], strides = [1, 1]} : vector<12x16xf32> to vector<1x16xf32>
    %4 = vector.extract_strided_slice %0 {offsets = [3, 0], sizes = [1, 16], strides = [1, 1]} : vector<12x16xf32> to vector<1x16xf32>
    %5 = vector.extract_strided_slice %0 {offsets = [4, 0], sizes = [1, 16], strides = [1, 1]} : vector<12x16xf32> to vector<1x16xf32>
    %6 = vector.extract_strided_slice %0 {offsets = [5, 0], sizes = [1, 16], strides = [1, 1]} : vector<12x16xf32> to vector<1x16xf32>
    %7 = vector.extract_strided_slice %0 {offsets = [6, 0], sizes = [1, 16], strides = [1, 1]} : vector<12x16xf32> to vector<1x16xf32>
    %8 = vector.extract_strided_slice %0 {offsets = [7, 0], sizes = [1, 16], strides = [1, 1]} : vector<12x16xf32> to vector<1x16xf32>
    %9 = vector.extract_strided_slice %0 {offsets = [8, 0], sizes = [1, 16], strides = [1, 1]} : vector<12x16xf32> to vector<1x16xf32>
    %10 = vector.extract_strided_slice %0 {offsets = [9, 0], sizes = [1, 16], strides = [1, 1]} : vector<12x16xf32> to vector<1x16xf32>
    %11 = vector.extract_strided_slice %0 {offsets = [10, 0], sizes = [1, 16], strides = [1, 1]} : vector<12x16xf32> to vector<1x16xf32>
    %12 = vector.extract_strided_slice %0 {offsets = [11, 0], sizes = [1, 1], strides = [1, 1]} : vector<12x16xf32> to vector<1x1xf32>
    %c0_1 = arith.constant 0 : index
    %c0_2 = arith.constant 0 : index
    %13 = vector.load %arg4[%c0_1, %c0_2] : memref<80x16xf32, #tpu.memory_space<vmem>>, vector<80x16xf32>
    %14 = vector.extract_strided_slice %13 {offsets = [0, 0], sizes = [16, 16], strides = [1, 1]} : vector<80x16xf32> to vector<16x16xf32>
    %15 = vector.extract_strided_slice %13 {offsets = [16, 0], sizes = [16, 16], strides = [1, 1]} : vector<80x16xf32> to vector<16x16xf32>
    %16 = vector.extract_strided_slice %13 {offsets = [32, 0], sizes = [16, 16], strides = [1, 1]} : vector<80x16xf32> to vector<16x16xf32>
    %17 = vector.extract_strided_slice %13 {offsets = [48, 0], sizes = [16, 16], strides = [1, 1]} : vector<80x16xf32> to vector<16x16xf32>
    %18 = vector.extract_strided_slice %13 {offsets = [64, 0], sizes = [16, 16], strides = [1, 1]} : vector<80x16xf32> to vector<16x16xf32>
    %c0_3 = arith.constant 0 : index
    %c0_4 = arith.constant 0 : index
    %19 = vector.load %arg0[%c0_3, %c0_4] : memref<256x16xf32, #tpu.memory_space<vmem>>, vector<64x16xf32>
    %c64 = arith.constant 64 : index
    %c0_5 = arith.constant 0 : index
    %20 = vector.load %arg0[%c64, %c0_5] : memref<256x16xf32, #tpu.memory_space<vmem>>, vector<64x16xf32>
    %c128 = arith.constant 128 : index
    %c0_6 = arith.constant 0 : index
    %21 = vector.load %arg0[%c128, %c0_6] : memref<256x16xf32, #tpu.memory_space<vmem>>, vector<64x16xf32>
    %c192 = arith.constant 192 : index
    %c0_7 = arith.constant 0 : index
    %22 = vector.load %arg0[%c192, %c0_7] : memref<256x16xf32, #tpu.memory_space<vmem>>, vector<64x16xf32>
    %23 = vector.broadcast %1 : vector<1x16xf32> to vector<64x16xf32>
    %24 = arith.mulf %19, %23 : vector<64x16xf32>
    %25 = vector.broadcast %2 : vector<1x16xf32> to vector<64x16xf32>
    %26 = arith.addf %24, %25 : vector<64x16xf32>
    %cst = arith.constant 0.000000e+00 : f32
    %27 = vector.broadcast %cst : f32 to vector<64x16xf32>
    %28 = arith.maximumf %26, %27 : vector<64x16xf32>
    %29 = vector.broadcast %3 : vector<1x16xf32> to vector<64x16xf32>
    %30 = arith.mulf %20, %29 : vector<64x16xf32>
    %31 = vector.broadcast %4 : vector<1x16xf32> to vector<64x16xf32>
    %32 = arith.addf %30, %31 : vector<64x16xf32>
    %cst_8 = arith.constant 0.000000e+00 : f32
    %33 = vector.broadcast %cst_8 : f32 to vector<64x16xf32>
    %34 = arith.maximumf %32, %33 : vector<64x16xf32>
    %35 = tpu.iota {dimensions = array<i32: 1>} : vector<8x64xi32>
    %36 = tpu.iota {dimensions = array<i32: 0>} : vector<8x64xi32>
    %c8_i32 = arith.constant 8 : i32
    %37 = vector.broadcast %c8_i32 : i32 to vector<8x64xi32>
    %38 = arith.muli %36, %37 : vector<8x64xi32>
    %39 = arith.cmpi sge, %35, %38 : vector<8x64xi32>
    %c1_i32 = arith.constant 1 : i32
    %40 = vector.broadcast %c1_i32 : i32 to vector<8x64xi32>
    %41 = arith.addi %36, %40 : vector<8x64xi32>
    %c8_i32_9 = arith.constant 8 : i32
    %42 = vector.broadcast %c8_i32_9 : i32 to vector<8x64xi32>
    %43 = arith.muli %41, %42 : vector<8x64xi32>
    %44 = arith.cmpi slt, %35, %43 : vector<8x64xi32>
    %45 = arith.andi %39, %44 : vector<8x64xi1>
    %46 = arith.extui %45 : vector<8x64xi1> to vector<8x64xi32>
    %47 = arith.sitofp %46 : vector<8x64xi32> to vector<8x64xf32>
    %48 = arith.mulf %21, %28 : vector<64x16xf32>
    %cst_10 = arith.constant dense<0.000000e+00> : vector<8x16xf32>
    %49 = tpu.matmul %47, %48, %cst_10 {dimension_numbers = #tpu.dot_dimension_numbers<[1], [0], [0], [1], [0, 0, 1, 1], [], []>} : vector<8x64xf32>, vector<64x16xf32>, vector<8x16xf32> -> vector<8x16xf32>
    %cst_11 = arith.constant 1.250000e-01 : f32
    %50 = vector.broadcast %cst_11 : f32 to vector<8x16xf32>
    %51 = arith.mulf %49, %50 : vector<8x16xf32>
    %52 = arith.mulf %22, %34 : vector<64x16xf32>
    %cst_12 = arith.constant dense<0.000000e+00> : vector<8x16xf32>
    %53 = tpu.matmul %47, %52, %cst_12 {dimension_numbers = #tpu.dot_dimension_numbers<[1], [0], [0], [1], [0, 0, 1, 1], [], []>} : vector<8x64xf32>, vector<64x16xf32>, vector<8x16xf32> -> vector<8x16xf32>
    %cst_13 = arith.constant 1.250000e-01 : f32
    %54 = vector.broadcast %cst_13 : f32 to vector<8x16xf32>
    %55 = arith.mulf %53, %54 : vector<8x16xf32>
    %cst_14 = arith.constant dense<0.000000e+00> : vector<8x16xf32>
    %56 = tpu.matmul %51, %14, %cst_14 {dimension_numbers = #tpu.dot_dimension_numbers<[1], [0], [0], [1], [0, 0, 1, 1], [], []>} : vector<8x16xf32>, vector<16x16xf32>, vector<8x16xf32> -> vector<8x16xf32>
    %57 = vector.broadcast %5 : vector<1x16xf32> to vector<8x16xf32>
    %58 = arith.addf %56, %57 : vector<8x16xf32>
    %cst_15 = arith.constant dense<0.000000e+00> : vector<8x16xf32>
    %59 = tpu.matmul %55, %16, %cst_15 {dimension_numbers = #tpu.dot_dimension_numbers<[1], [0], [0], [1], [0, 0, 1, 1], [], []>} : vector<8x16xf32>, vector<16x16xf32>, vector<8x16xf32> -> vector<8x16xf32>
    %60 = vector.broadcast %7 : vector<1x16xf32> to vector<8x16xf32>
    %61 = arith.addf %59, %60 : vector<8x16xf32>
    %62 = arith.addf %58, %61 : vector<8x16xf32>
    %c0_16 = arith.constant 0 : index
    %c0_17 = arith.constant 0 : index
    %63 = vector.load %arg1[%c0_16, %c0_17] : memref<8x8xf32, #tpu.memory_space<vmem>>, vector<8x8xf32>
    %c0_18 = arith.constant 0 : index
    %c0_19 = arith.constant 0 : index
    %64 = vector.load %arg2[%c0_18, %c0_19] : memref<8x16xf32, #tpu.memory_space<vmem>>, vector<8x16xf32>
    %c0_i32 = arith.constant 0 : i32
    %cst_20 = arith.constant dense<0.000000e+00> : vector<8x16xf32>
    %65 = tpu.matmul %64, %15, %cst_20 {dimension_numbers = #tpu.dot_dimension_numbers<[1], [0], [0], [1], [0, 0, 1, 1], [], []>} : vector<8x16xf32>, vector<16x16xf32>, vector<8x16xf32> -> vector<8x16xf32>
    %66 = vector.broadcast %6 : vector<1x16xf32> to vector<8x16xf32>
    %67 = arith.addf %65, %66 : vector<8x16xf32>
    %cst_21 = arith.constant dense<0.000000e+00> : vector<8x16xf32>
    %68 = tpu.matmul %63, %67, %cst_21 {dimension_numbers = #tpu.dot_dimension_numbers<[1], [0], [0], [1], [0, 0, 1, 1], [], []>} : vector<8x8xf32>, vector<8x16xf32>, vector<8x16xf32> -> vector<8x16xf32>
    %cst_22 = arith.constant 1.250000e-01 : f32
    %69 = vector.broadcast %cst_22 : f32 to vector<8x16xf32>
    %70 = arith.mulf %68, %69 : vector<8x16xf32>
    %71 = arith.addf %62, %70 : vector<8x16xf32>
    %cst_23 = arith.constant 0.333333343 : f32
    %72 = vector.broadcast %cst_23 : f32 to vector<8x16xf32>
    %73 = arith.mulf %71, %72 : vector<8x16xf32>
    %cst_24 = arith.constant 0.000000e+00 : f32
    %74 = vector.broadcast %cst_24 : f32 to vector<8x16xf32>
    %75 = arith.maximumf %73, %74 : vector<8x16xf32>
    %c1_i32_25 = arith.constant 1 : i32
    %cst_26 = arith.constant dense<0.000000e+00> : vector<8x16xf32>
    %76 = tpu.matmul %75, %15, %cst_26 {dimension_numbers = #tpu.dot_dimension_numbers<[1], [0], [0], [1], [0, 0, 1, 1], [], []>} : vector<8x16xf32>, vector<16x16xf32>, vector<8x16xf32> -> vector<8x16xf32>
    %77 = vector.broadcast %6 : vector<1x16xf32> to vector<8x16xf32>
    %78 = arith.addf %76, %77 : vector<8x16xf32>
    %cst_27 = arith.constant dense<0.000000e+00> : vector<8x16xf32>
    %79 = tpu.matmul %63, %78, %cst_27 {dimension_numbers = #tpu.dot_dimension_numbers<[1], [0], [0], [1], [0, 0, 1, 1], [], []>} : vector<8x8xf32>, vector<8x16xf32>, vector<8x16xf32> -> vector<8x16xf32>
    %cst_28 = arith.constant 1.250000e-01 : f32
    %80 = vector.broadcast %cst_28 : f32 to vector<8x16xf32>
    %81 = arith.mulf %79, %80 : vector<8x16xf32>
    %82 = arith.addf %62, %81 : vector<8x16xf32>
    %cst_29 = arith.constant 0.333333343 : f32
    %83 = vector.broadcast %cst_29 : f32 to vector<8x16xf32>
    %84 = arith.mulf %82, %83 : vector<8x16xf32>
    %cst_30 = arith.constant 0.000000e+00 : f32
    %85 = vector.broadcast %cst_30 : f32 to vector<8x16xf32>
    %86 = arith.maximumf %84, %85 : vector<8x16xf32>
    %c2_i32 = arith.constant 2 : i32
    %cst_31 = arith.constant dense<0.000000e+00> : vector<8x16xf32>
    %87 = tpu.matmul %86, %15, %cst_31 {dimension_numbers = #tpu.dot_dimension_numbers<[1], [0], [0], [1], [0, 0, 1, 1], [], []>} : vector<8x16xf32>, vector<16x16xf32>, vector<8x16xf32> -> vector<8x16xf32>
    %88 = vector.broadcast %6 : vector<1x16xf32> to vector<8x16xf32>
    %89 = arith.addf %87, %88 : vector<8x16xf32>
    %cst_32 = arith.constant dense<0.000000e+00> : vector<8x16xf32>
    %90 = tpu.matmul %63, %89, %cst_32 {dimension_numbers = #tpu.dot_dimension_numbers<[1], [0], [0], [1], [0, 0, 1, 1], [], []>} : vector<8x8xf32>, vector<8x16xf32>, vector<8x16xf32> -> vector<8x16xf32>
    %cst_33 = arith.constant 1.250000e-01 : f32
    %91 = vector.broadcast %cst_33 : f32 to vector<8x16xf32>
    %92 = arith.mulf %90, %91 : vector<8x16xf32>
    %93 = arith.addf %62, %92 : vector<8x16xf32>
    %cst_34 = arith.constant 0.333333343 : f32
    %94 = vector.broadcast %cst_34 : f32 to vector<8x16xf32>
    %95 = arith.mulf %93, %94 : vector<8x16xf32>
    %cst_35 = arith.constant 0.000000e+00 : f32
    %96 = vector.broadcast %cst_35 : f32 to vector<8x16xf32>
    %97 = arith.maximumf %95, %96 : vector<8x16xf32>
    %cst_36 = arith.constant dense<0.000000e+00> : vector<16xf32>
    %98 = vector.multi_reduction <add>, %97, %cst_36 [0] : vector<8x16xf32> to vector<16xf32>
    %99 = vector.shape_cast %98 : vector<16xf32> to vector<1x16xf32>
    %cst_37 = arith.constant 1.250000e-01 : f32
    %100 = vector.broadcast %cst_37 : f32 to vector<1x16xf32>
    %101 = arith.mulf %99, %100 : vector<1x16xf32>
    %c0_38 = arith.constant 0 : index
    %c0_39 = arith.constant 0 : index
    %102 = vector.load %arg3[%c0_38, %c0_39] : memref<4x8xf32, #tpu.memory_space<vmem>>, vector<4x8xf32>
    %cst_40 = arith.constant dense<0.000000e+00> : vector<4x16xf32>
    %103 = tpu.matmul %102, %97, %cst_40 {dimension_numbers = #tpu.dot_dimension_numbers<[1], [0], [0], [1], [0, 0, 1, 1], [], []>} : vector<4x8xf32>, vector<8x16xf32>, vector<4x16xf32> -> vector<4x16xf32>
    %cst_41 = arith.constant dense<0.000000e+00> : vector<1x16xf32>
    %104 = tpu.matmul %101, %17, %cst_41 {dimension_numbers = #tpu.dot_dimension_numbers<[1], [0], [0], [1], [0, 0, 1, 1], [], []>} : vector<1x16xf32>, vector<16x16xf32>, vector<1x16xf32> -> vector<1x16xf32>
    %105 = arith.addf %104, %8 : vector<1x16xf32>
    %cst_42 = arith.constant 0.000000e+00 : f32
    %106 = vector.broadcast %cst_42 : f32 to vector<1x16xf32>
    %107 = arith.maximumf %105, %106 : vector<1x16xf32>
    %cst_43 = arith.constant dense<0.000000e+00> : vector<4x16xf32>
    %108 = tpu.matmul %103, %18, %cst_43 {dimension_numbers = #tpu.dot_dimension_numbers<[1], [0], [0], [1], [0, 0, 1, 1], [], []>} : vector<4x16xf32>, vector<16x16xf32>, vector<4x16xf32> -> vector<4x16xf32>
    %109 = vector.broadcast %9 : vector<1x16xf32> to vector<4x16xf32>
    %110 = arith.addf %108, %109 : vector<4x16xf32>
    %cst_44 = arith.constant 0.000000e+00 : f32
    %111 = vector.broadcast %cst_44 : f32 to vector<4x16xf32>
    %112 = arith.maximumf %110, %111 : vector<4x16xf32>
    %113 = arith.mulf %107, %10 : vector<1x16xf32>
    %cst_45 = arith.constant dense<0.000000e+00> : vector<1xf32>
    %114 = vector.multi_reduction <add>, %113, %cst_45 [1] : vector<1x16xf32> to vector<1xf32>
    %115 = vector.shape_cast %114 : vector<1xf32> to vector<1x1xf32>
    %116 = arith.addf %115, %12 : vector<1x1xf32>
    %117 = vector.broadcast %11 : vector<1x16xf32> to vector<4x16xf32>
    %118 = arith.mulf %112, %117 : vector<4x16xf32>
    %cst_46 = arith.constant dense<0.000000e+00> : vector<4xf32>
    %119 = vector.multi_reduction <add>, %118, %cst_46 [1] : vector<4x16xf32> to vector<4xf32>
    %120 = vector.shape_cast %119 : vector<4xf32> to vector<4x1xf32>
    %121 = vector.broadcast %116 : vector<1x1xf32> to vector<4x1xf32>
    %122 = arith.addf %120, %121 : vector<4x1xf32>
    %123 = math.exp %122 : vector<4x1xf32>
    %124 = vector.shape_cast %123 : vector<4x1xf32> to vector<4x1xf32>
    %125 = vector.broadcast %124 : vector<4x1xf32> to vector<4x128xf32>
    %c0_47 = arith.constant 0 : index
    %c0_48 = arith.constant 0 : index
    %126 = vector.load %arg6[%c0_47, %c0_48] : memref<4x128xf32, #tpu.memory_space<vmem>>, vector<4x128xf32>
    tpu.vector_store %arg6[%c0_47, %c0_48], %125 {strides = array<i32>} : memref<4x128xf32, #tpu.memory_space<vmem>>, vector<4x128xf32>,
    return
  }
}

</mosaic_0001>

<llo_original>
// kernel: tpu_custom_call.1
$region0: #{tpu_custom_call.1}
  #allocation0 [shape = 'u32[]', space=smem, size = 0x4, offset = 0x4, fixed_abs, tag = 'smem constant byte address 0x4 - core index']
  #allocation1 [shape = 'u32[144,128]{1,0:T(1,128)}', space=vmem, size = 0x12000, scoped, tag = 'internal scratch']
  %s0 = inlined_call_operand.vmem [shape: f32[256,16], index: 0, kind: input, shape index: {}]
  %s1 = inlined_call_operand.vmem [shape: f32[8,8], index: 1, kind: input, shape index: {}]
  %s2 = inlined_call_operand.vmem [shape: f32[8,16], index: 2, kind: input, shape index: {}]
  %s3 = inlined_call_operand.vmem [shape: f32[4,8], index: 3, kind: input, shape index: {}]
  %s4 = inlined_call_operand.vmem [shape: f32[80,16], index: 4, kind: input, shape index: {}]
  %s5 = inlined_call_operand.vmem [shape: f32[12,16], index: 5, kind: input, shape index: {}]
  %s6 = inlined_call_operand.hbm [shape: f32[4,128], index: 6, kind: output, shape index: {}]
  %s7 = sld [smem:[#allocation0]]
  $region34: #{tpu_custom_call.1} parent=0
    _
  %s9 = ssub.s32 1, %s7
  %s10 = scalar_select 0, %s9, %s7
  $region1: #{tpu_custom_call.1} parent=0
    #allocation2 [shape = 'u8[2048]{0}', space=vmem, size = 0x800, scoped, tag = 'output window, operand 0, single buffered']
    #allocation3 [shape = 's32[1]{0}', space=sflag, size = 0x4, scoped, tag = 'scoped memory for tpu_custom_call.1']
    %11 = vsyncpa [#allocation3], 0
    // Predicated region
    $region2: #{tpu_custom_call.1} parent=1 // pred_check
      _
    $region3: #{tpu_custom_call.1} parent=1 // pred_check_branch
      %13 = sbr.rel (0) target = $region5
    $region4: #{tpu_custom_call.1} parent=1 // pred_region
      _
    $region5: #{tpu_custom_call.1} parent=1 // pred_fallthru
      _
    // Predicated region
    $region6: #{tpu_custom_call.1} parent=1 // pred_check
      _
    $region7: #{tpu_custom_call.1} parent=1 // pred_check_branch
      %15 = sbr.rel (0) target = $region9
    $region8: #{tpu_custom_call.1} parent=1 // pred_region
      _
    $region9: #{tpu_custom_call.1} parent=1 // pred_fallthru
      _
    // Predicated region
    $region10: #{tpu_custom_call.1} parent=1 // pred_check
      _
    $region11: #{tpu_custom_call.1} parent=1 // pred_check_branch
      %17 = sbr.rel (0) target = $region13
    $region12: #{tpu_custom_call.1} parent=1 // pred_region
      _
    $region13: #{tpu_custom_call.1} parent=1 // pred_fallthru
      _
    // Predicated region
    $region14: #{tpu_custom_call.1} parent=1 // pred_check
      _
    $region15: #{tpu_custom_call.1} parent=1 // pred_check_branch
      %19 = sbr.rel (0) target = $region17
    $region16: #{tpu_custom_call.1} parent=1 // pred_region
      _
    $region17: #{tpu_custom_call.1} parent=1 // pred_fallthru
      _
    // Predicated region
    $region18: #{tpu_custom_call.1} parent=1 // pred_check
      _
    $region19: #{tpu_custom_call.1} parent=1 // pred_check_branch
      %21 = sbr.rel (0) target = $region21
    $region20: #{tpu_custom_call.1} parent=1 // pred_region
      _
    $region21: #{tpu_custom_call.1} parent=1 // pred_fallthru
      _
    // Predicated region
    $region22: #{tpu_custom_call.1} parent=1 // pred_check
      _
    $region23: #{tpu_custom_call.1} parent=1 // pred_check_branch
      %23 = sbr.rel (0) target = $region25
    $region24: #{tpu_custom_call.1} parent=1 // pred_region
      _
    $region25: #{tpu_custom_call.1} parent=1 // pred_fallthru
      _
    %v24 = vld [vmem:[%s5] sm:$0xff]
    %v25 = vld [vmem:[%s5 + $0x8] sm:$0xf]
    %v26 = vld [vmem:[%s4] sm:$0xff]
    %v27 = vld [vmem:[%s4 + $0x8] sm:$0xff]
    %v28 = vld [vmem:[%s4 + $0x10] sm:$0xff]
    %v29 = vld [vmem:[%s4 + $0x18] sm:$0xff]
    %v30 = vld [vmem:[%s4 + $0x20] sm:$0xff]
    %v31 = vld [vmem:[%s4 + $0x28] sm:$0xff]
    %v32 = vld [vmem:[%s4 + $0x30] sm:$0xff]
    %v33 = vld [vmem:[%s4 + $0x38] sm:$0xff]
    %v34 = vld [vmem:[%s4 + $0x40] sm:$0xff]
    %v35 = vld [vmem:[%s4 + $0x48] sm:$0xff]
    %v36 = vld [vmem:[%s0] sm:$0xff]
    %v37 = vld [vmem:[%s0 + $0x8] sm:$0xff]
    %v38 = vld [vmem:[%s0 + $0x10] sm:$0xff]
    %v39 = vld [vmem:[%s0 + $0x18] sm:$0xff]
    %v40 = vld [vmem:[%s0 + $0x20] sm:$0xff]
    %v41 = vld [vmem:[%s0 + $0x28] sm:$0xff]
    %v42 = vld [vmem:[%s0 + $0x30] sm:$0xff]
    %v43 = vld [vmem:[%s0 + $0x38] sm:$0xff]
    %v44 = vld [vmem:[%s0 + $0x40] sm:$0xff]
    %v45 = vld [vmem:[%s0 + $0x48] sm:$0xff]
    %v46 = vld [vmem:[%s0 + $0x50] sm:$0xff]
    %v47 = vld [vmem:[%s0 + $0x58] sm:$0xff]
    %v48 = vld [vmem:[%s0 + $0x60] sm:$0xff]
    %v49 = vld [vmem:[%s0 + $0x68] sm:$0xff]
    %v50 = vld [vmem:[%s0 + $0x70] sm:$0xff]
    %v51 = vld [vmem:[%s0 + $0x78] sm:$0xff]
    %v52 = vld [vmem:[%s0 + $0x80] sm:$0xff]
    %v53 = vld [vmem:[%s0 + $0x88] sm:$0xff]
    %v54 = vld [vmem:[%s0 + $0x90] sm:$0xff]
    %v55 = vld [vmem:[%s0 + $0x98] sm:$0xff]
    %v56 = vld [vmem:[%s0 + $0xa0] sm:$0xff]
    %v57 = vld [vmem:[%s0 + $0xa8] sm:$0xff]
    %v58 = vld [vmem:[%s0 + $0xb0] sm:$0xff]
    %v59 = vld [vmem:[%s0 + $0xb8] sm:$0xff]
    %v60 = vld [vmem:[%s0 + $0xc0] sm:$0xff]
    %v61 = vld [vmem:[%s0 + $0xc8] sm:$0xff]
    %v62 = vld [vmem:[%s0 + $0xd0] sm:$0xff]
    %v63 = vld [vmem:[%s0 + $0xd8] sm:$0xff]
    %v64 = vld [vmem:[%s0 + $0xe0] sm:$0xff]
    %v65 = vld [vmem:[%s0 + $0xe8] sm:$0xff]
    %v66 = vld [vmem:[%s0 + $0xf0] sm:$0xff]
    %v67 = vld [vmem:[%s0 + $0xf8] sm:$0xff]
    %v68 = vlaneseq
    %v69 = vshrl.u32 %v68, 7
    %v70 = vsub.s32 0, %v69
    %v71 = vrot.slane %v24, %v70
    %v72 = vmul.f32 %v36, %v71
    %v73 = vmul.f32 %v37, %v71
    %v74 = vmul.f32 %v38, %v71
    %v75 = vmul.f32 %v39, %v71
    %v76 = vmul.f32 %v40, %v71
    %v77 = vmul.f32 %v41, %v71
    %v78 = vmul.f32 %v42, %v71
    %v79 = vmul.f32 %v43, %v71
    %v80 = vlaneseq
    %v81 = vshrl.u32 %v80, 7
    %v82 = vsub.s32 1, %v81
    %v83 = vrot.slane %v24, %v82
    %v84 = vadd.f32 %v72, %v83
    %v85 = vadd.f32 %v73, %v83
    %v86 = vadd.f32 %v74, %v83
    %v87 = vadd.f32 %v75, %v83
    %v88 = vadd.f32 %v76, %v83
    %v89 = vadd.f32 %v77, %v83
    %v90 = vadd.f32 %v78, %v83
    %v91 = vadd.f32 %v79, %v83
    %v92 = vmax.f32 %v84, 0.0
    %v93 = vmax.f32 %v85, 0.0
    %v94 = vmax.f32 %v86, 0.0
    %v95 = vmax.f32 %v87, 0.0
    %v96 = vmax.f32 %v88, 0.0
    %v97 = vmax.f32 %v89, 0.0
    %v98 = vmax.f32 %v90, 0.0
    %v99 = vmax.f32 %v91, 0.0
    %v100 = vlaneseq
    %v101 = vshrl.u32 %v100, 7
    %v102 = vsub.s32 2, %v101
    %v103 = vrot.slane %v24, %v102
    %v104 = vmul.f32 %v44, %v103
    %v105 = vmul.f32 %v45, %v103
    %v106 = vmul.f32 %v46, %v103
    %v107 = vmul.f32 %v47, %v103
    %v108 = vmul.f32 %v48, %v103
    %v109 = vmul.f32 %v49, %v103
    %v110 = vmul.f32 %v50, %v103
    %v111 = vmul.f32 %v51, %v103
    %v112 = vlaneseq
    %v113 = vshrl.u32 %v112, 7
    %v114 = vsub.s32 3, %v113
    %v115 = vrot.slane %v24, %v114
    %v116 = vadd.f32 %v104, %v115
    %v117 = vadd.f32 %v105, %v115
    %v118 = vadd.f32 %v106, %v115
    %v119 = vadd.f32 %v107, %v115
    %v120 = vadd.f32 %v108, %v115
    %v121 = vadd.f32 %v109, %v115
    %v122 = vadd.f32 %v110, %v115
    %v123 = vadd.f32 %v111, %v115
    %v124 = vmax.f32 %v116, 0.0
    %v125 = vmax.f32 %v117, 0.0
    %v126 = vmax.f32 %v118, 0.0
    %v127 = vmax.f32 %v119, 0.0
    %v128 = vmax.f32 %v120, 0.0
    %v129 = vmax.f32 %v121, 0.0
    %v130 = vmax.f32 %v122, 0.0
    %v131 = vmax.f32 %v123, 0.0
    %v132 = vlaneseq
    %v133 = vand.u32 %v132, 127
    %v134 = vlaneseq
    %v135 = vshrl.u32 %v134, 7
    %v136 = vmul.u32 %v135, 8
    %vm137 = vcmp.ge.s32.totalorder %v133, %v136
    %v138 = vadd.s32 %v135, 1
    %v139 = vmul.u32 %v138, 8
    %vm140 = vcmp.lt.s32.totalorder %v133, %v139
    %vm141 = vmand %vm137, %vm140
    %v142 = vsel %vm141, 1, 0
    %v143 = vcvt.s32.f32 %v142
    %v144 = vmul.f32 %v52, %v92
    %v145 = vmul.f32 %v53, %v93
    %v146 = vmul.f32 %v54, %v94
    %v147 = vmul.f32 %v55, %v95
    %v148 = vmul.f32 %v56, %v96
    %v149 = vmul.f32 %v57, %v97
    %v150 = vmul.f32 %v58, %v98
    %v151 = vmul.f32 %v59, %v99
    %vm152 = vcmask 523264
    %v154 = vsel %vm152, %v143, 0
    %156 = vmatprep.subr.mxu0 0.0
    %157 = vmatpush1.msra.mxu0 %v144
    %158 = vmatprep.subr.mxu0 0.0
    %159 = vmatpush1.msra.mxu0 %v145
    %160 = vmatprep.subr.mxu0 0.0
    %161 = vmatpush1.msra.mxu0 %v146
    %162 = vmatprep.subr.mxu0 0.0
    %163 = vmatpush1.msra.mxu0 %v147
    %164 = vmatprep.subr.mxu0 0.0
    %165 = vmatpush1.msra.mxu0 %v148
    %166 = vmatprep.subr.mxu0 0.0
    %167 = vmatpush1.msra.mxu0 %v149
    %168 = vmatprep.subr.mxu0 0.0
    %169 = vmatpush1.msra.mxu0 %v150
    %170 = vmatprep.subr.mxu0 0.0
    %171 = vmatpush1.msra.mxu0 %v151
    %172 = vmatprep.subr.mxu0 0.0
    %173 = vmatpush1.msra.mxu0 0.0
    %174 = vmatprep.subr.mxu0 0.0
    %175 = vmatpush1.msra.mxu0 0.0
    %176 = vmatprep.subr.mxu0 0.0
    %177 = vmatpush1.msra.mxu0 0.0
    %178 = vmatprep.subr.mxu0 0.0
    %179 = vmatpush1.msra.mxu0 0.0
    %180 = vmatprep.subr.mxu0 0.0
    %181 = vmatpush1.msra.mxu0 0.0
    %182 = vmatprep.subr.mxu0 0.0
    %183 = vmatpush1.msra.mxu0 0.0
    %184 = vmatprep.subr.mxu0 0.0
    %185 = vmatpush1.msra.mxu0 0.0
    %186 = vmatprep.subr.mxu0 0.0
    %187 = vmatpush1.msra.mxu0 0.0
    %188 = vmatprep.subr.mxu0 0.0
    %189 = vmatpush1.msra.mxu0 0.0
    %190 = vmatprep.subr.mxu0 0.0
    %191 = vmatpush1.msra.mxu0 0.0
    %192 = vmatprep.subr.mxu0 0.0
    %193 = vmatpush1.msra.mxu0 0.0
    %194 = vmatprep.subr.mxu0 0.0
    %195 = vmatpush1.msra.mxu0 0.0
    %196 = vmatprep.subr.mxu0 0.0
    %197 = vmatpush1.msra.mxu0 0.0
    %198 = vmatprep.subr.mxu0 0.0
    %199 = vmatpush1.msra.mxu0 0.0
    %200 = vmatprep.subr.mxu0 0.0
    %201 = vmatpush1.msra.mxu0 0.0
    %202 = vmatprep.subr.mxu0 0.0
    %203 = vmatpush1.msra.mxu0 0.0
    %204 = vmatprep.subr.mxu0 0.0
    %205 = vmatpush1.msra.mxu0 0.0
    %206 = vmatprep.subr.mxu0 0.0
    %207 = vmatpush1.msra.mxu0 0.0
    %208 = vmatprep.subr.mxu0 0.0
    %209 = vmatpush1.msra.mxu0 0.0
    %210 = vmatprep.subr.mxu0 0.0
    %211 = vmatpush1.msra.mxu0 0.0
    %212 = vmatprep.subr.mxu0 0.0
    %213 = vmatpush1.msra.mxu0 0.0
    %214 = vmatprep.subr.mxu0 0.0
    %215 = vmatpush1.msra.mxu0 0.0
    %216 = vmatprep.subr.mxu0 0.0
    %217 = vmatpush1.msra.mxu0 0.0
    %218 = vmatprep.subr.mxu0 0.0
    %219 = vmatpush1.msra.mxu0 0.0
    %220 = vmatprep.mubr.f32.mxu0 0.0
    %221 = vmatmul.mubr.f32.gmra.mrb[0].mxu0 %v154
    %v222 = vpop.f32.mrb[0].mxu0
    %v223 = vadd.f32 0.0, %v222
    %v224 = vpop.f32.mrb[0].mxu0
    %225 = vdwg.mxu0
    %v226 = vmul.f32 %v223, 0.125
    %v227 = vmul.f32 %v60, %v124
    %v228 = vmul.f32 %v61, %v125
    %v229 = vmul.f32 %v62, %v126
    %v230 = vmul.f32 %v63, %v127
    %v231 = vmul.f32 %v64, %v128
    %v232 = vmul.f32 %v65, %v129
    %v233 = vmul.f32 %v66, %v130
    %v234 = vmul.f32 %v67, %v131
    %235 = vmatprep.subr.mxu0 0.0
    %236 = vmatpush1.msra.mxu0 %v227
    %237 = vmatprep.subr.mxu0 0.0
    %238 = vmatpush1.msra.mxu0 %v228
    %239 = vmatprep.subr.mxu0 0.0
    %240 = vmatpush1.msra.mxu0 %v229
    %241 = vmatprep.subr.mxu0 0.0
    %242 = vmatpush1.msra.mxu0 %v230
    %243 = vmatprep.subr.mxu0 0.0
    %244 = vmatpush1.msra.mxu0 %v231
    %245 = vmatprep.subr.mxu0 0.0
    %246 = vmatpush1.msra.mxu0 %v232
    %247 = vmatprep.subr.mxu0 0.0
    %248 = vmatpush1.msra.mxu0 %v233
    %249 = vmatprep.subr.mxu0 0.0
    %250 = vmatpush1.msra.mxu0 %v234
    %251 = vmatprep.subr.mxu0 0.0
    %252 = vmatpush1.msra.mxu0 0.0
    %253 = vmatprep.subr.mxu0 0.0
    %254 = vmatpush1.msra.mxu0 0.0
    %255 = vmatprep.subr.mxu0 0.0
    %256 = vmatpush1.msra.mxu0 0.0
    %257 = vmatprep.subr.mxu0 0.0
    %258 = vmatpush1.msra.mxu0 0.0
    %259 = vmatprep.subr.mxu0 0.0
    %260 = vmatpush1.msra.mxu0 0.0
    %261 = vmatprep.subr.mxu0 0.0
    %262 = vmatpush1.msra.mxu0 0.0
    %263 = vmatprep.subr.mxu0 0.0
    %264 = vmatpush1.msra.mxu0 0.0
    %265 = vmatprep.subr.mxu0 0.0
    %266 = vmatpush1.msra.mxu0 0.0
    %267 = vmatprep.subr.mxu0 0.0
    %268 = vmatpush1.msra.mxu0 0.0
    %269 = vmatprep.subr.mxu0 0.0
    %270 = vmatpush1.msra.mxu0 0.0
    %271 = vmatprep.subr.mxu0 0.0
    %272 = vmatpush1.msra.mxu0 0.0
    %273 = vmatprep.subr.mxu0 0.0
    %274 = vmatpush1.msra.mxu0 0.0
    %275 = vmatprep.subr.mxu0 0.0
    %276 = vmatpush1.msra.mxu0 0.0
    %277 = vmatprep.subr.mxu0 0.0
    %278 = vmatpush1.msra.mxu0 0.0
    %279 = vmatprep.subr.mxu0 0.0
    %280 = vmatpush1.msra.mxu0 0.0
    %281 = vmatprep.subr.mxu0 0.0
    %282 = vmatpush1.msra.mxu0 0.0
    %283 = vmatprep.subr.mxu0 0.0
    %284 = vmatpush1.msra.mxu0 0.0
    %285 = vmatprep.subr.mxu0 0.0
    %286 = vmatpush1.msra.mxu0 0.0
    %287 = vmatprep.subr.mxu0 0.0
    %288 = vmatpush1.msra.mxu0 0.0
    %289 = vmatprep.subr.mxu0 0.0
    %290 = vmatpush1.msra.mxu0 0.0
    %291 = vmatprep.subr.mxu0 0.0
    %292 = vmatpush1.msra.mxu0 0.0
    %293 = vmatprep.subr.mxu0 0.0
    %294 = vmatpush1.msra.mxu0 0.0
    %295 = vmatprep.subr.mxu0 0.0
    %296 = vmatpush1.msra.mxu0 0.0
    %297 = vmatprep.subr.mxu0 0.0
    %298 = vmatpush1.msra.mxu0 0.0
    %299 = vmatprep.mubr.f32.mxu0 0.0
    %300 = vmatmul.mubr.f32.gmra.mrb[0].mxu0 %v154
    %v301 = vpop.f32.mrb[0].mxu0
    %v302 = vadd.f32 0.0, %v301
    %v303 = vpop.f32.mrb[0].mxu0
    %304 = vdwg.mxu0
    %v305 = vmul.f32 %v302, 0.125
    %v306 = vlaneseq
    %v307 = vshrl.u32 %v306, 7
    %v308 = vsub.s32 4, %v307
    %v309 = vrot.slane %v24, %v308
    %vm310 = vcmask 130048
    %v312 = vsel %vm310, %v226, 0
    %314 = vmatprep.subr.mxu0 0.0
    %315 = vmatpush1.msra.mxu0 %v26
    %316 = vmatprep.subr.mxu0 0.0
    %317 = vmatpush1.msra.mxu0 %v27
    %318 = vmatprep.subr.mxu0 0.0
    %319 = vmatpush1.msra.mxu0 0.0
    %320 = vmatprep.subr.mxu0 0.0
    %321 = vmatpush1.msra.mxu0 0.0
    %322 = vmatprep.subr.mxu0 0.0
    %323 = vmatpush1.msra.mxu0 0.0
    %324 = vmatprep.subr.mxu0 0.0
    %325 = vmatpush1.msra.mxu0 0.0
    %326 = vmatprep.subr.mxu0 0.0
    %327 = vmatpush1.msra.mxu0 0.0
    %328 = vmatprep.subr.mxu0 0.0
    %329 = vmatpush1.msra.mxu0 0.0
    %330 = vmatprep.subr.mxu0 0.0
    %331 = vmatpush1.msra.mxu0 0.0
    %332 = vmatprep.subr.mxu0 0.0
    %333 = vmatpush1.msra.mxu0 0.0
    %334 = vmatprep.subr.mxu0 0.0
    %335 = vmatpush1.msra.mxu0 0.0
    %336 = vmatprep.subr.mxu0 0.0
    %337 = vmatpush1.msra.mxu0 0.0
    %338 = vmatprep.subr.mxu0 0.0
    %339 = vmatpush1.msra.mxu0 0.0
    %340 = vmatprep.subr.mxu0 0.0
    %341 = vmatpush1.msra.mxu0 0.0
    %342 = vmatprep.subr.mxu0 0.0
    %343 = vmatpush1.msra.mxu0 0.0
    %344 = vmatprep.subr.mxu0 0.0
    %345 = vmatpush1.msra.mxu0 0.0
    %346 = vmatprep.subr.mxu0 0.0
    %347 = vmatpush1.msra.mxu0 0.0
    %348 = vmatprep.subr.mxu0 0.0
    %349 = vmatpush1.msra.mxu0 0.0
    %350 = vmatprep.subr.mxu0 0.0
    %351 = vmatpush1.msra.mxu0 0.0
    %352 = vmatprep.subr.mxu0 0.0
    %353 = vmatpush1.msra.mxu0 0.0
    %354 = vmatprep.subr.mxu0 0.0
    %355 = vmatpush1.msra.mxu0 0.0
    %356 = vmatprep.subr.mxu0 0.0
    %357 = vmatpush1.msra.mxu0 0.0
    %358 = vmatprep.subr.mxu0 0.0
    %359 = vmatpush1.msra.mxu0 0.0
    %360 = vmatprep.subr.mxu0 0.0
    %361 = vmatpush1.msra.mxu0 0.0
    %362 = vmatprep.subr.mxu0 0.0
    %363 = vmatpush1.msra.mxu0 0.0
    %364 = vmatprep.subr.mxu0 0.0
    %365 = vmatpush1.msra.mxu0 0.0
    %366 = vmatprep.subr.mxu0 0.0
    %367 = vmatpush1.msra.mxu0 0.0
    %368 = vmatprep.subr.mxu0 0.0
    %369 = vmatpush1.msra.mxu0 0.0
    %370 = vmatprep.subr.mxu0 0.0
    %371 = vmatpush1.msra.mxu0 0.0
    %372 = vmatprep.subr.mxu0 0.0
    %373 = vmatpush1.msra.mxu0 0.0
    %374 = vmatprep.subr.mxu0 0.0
    %375 = vmatpush1.msra.mxu0 0.0
    %376 = vmatprep.subr.mxu0 0.0
    %377 = vmatpush1.msra.mxu0 0.0
    %378 = vmatprep.mubr.f32.mxu0 0.0
    %379 = vmatmul.mubr.f32.gmra.mrb[0].mxu0 %v312
    %v380 = vpop.f32.mrb[0].mxu0
    %v381 = vadd.f32 %v309, %v380
    %v382 = vpop.f32.mrb[0].mxu0
    %383 = vdwg.mxu0
    %v384 = vlaneseq
    %v385 = vshrl.u32 %v384, 7
    %v386 = vsub.s32 6, %v385
    %v387 = vrot.slane %v24, %v386
    %v389 = vsel %vm310, %v305, 0
    %391 = vmatprep.subr.mxu0 0.0
    %392 = vmatpush1.msra.mxu0 %v30
    %393 = vmatprep.subr.mxu0 0.0
    %394 = vmatpush1.msra.mxu0 %v31
    %395 = vmatprep.subr.mxu0 0.0
    %396 = vmatpush1.msra.mxu0 0.0
    %397 = vmatprep.subr.mxu0 0.0
    %398 = vmatpush1.msra.mxu0 0.0
    %399 = vmatprep.subr.mxu0 0.0
    %400 = vmatpush1.msra.mxu0 0.0
    %401 = vmatprep.subr.mxu0 0.0
    %402 = vmatpush1.msra.mxu0 0.0
    %403 = vmatprep.subr.mxu0 0.0
    %404 = vmatpush1.msra.mxu0 0.0
    %405 = vmatprep.subr.mxu0 0.0
    %406 = vmatpush1.msra.mxu0 0.0
    %407 = vmatprep.subr.mxu0 0.0
    %408 = vmatpush1.msra.mxu0 0.0
    %409 = vmatprep.subr.mxu0 0.0
    %410 = vmatpush1.msra.mxu0 0.0
    %411 = vmatprep.subr.mxu0 0.0
    %412 = vmatpush1.msra.mxu0 0.0
    %413 = vmatprep.subr.mxu0 0.0
    %414 = vmatpush1.msra.mxu0 0.0
    %415 = vmatprep.subr.mxu0 0.0
    %416 = vmatpush1.msra.mxu0 0.0
    %417 = vmatprep.subr.mxu0 0.0
    %418 = vmatpush1.msra.mxu0 0.0
    %419 = vmatprep.subr.mxu0 0.0
    %420 = vmatpush1.msra.mxu0 0.0
    %421 = vmatprep.subr.mxu0 0.0
    %422 = vmatpush1.msra.mxu0 0.0
    %423 = vmatprep.subr.mxu0 0.0
    %424 = vmatpush1.msra.mxu0 0.0
    %425 = vmatprep.subr.mxu0 0.0
    %426 = vmatpush1.msra.mxu0 0.0
    %427 = vmatprep.subr.mxu0 0.0
    %428 = vmatpush1.msra.mxu0 0.0
    %429 = vmatprep.subr.mxu0 0.0
    %430 = vmatpush1.msra.mxu0 0.0
    %431 = vmatprep.subr.mxu0 0.0
    %432 = vmatpush1.msra.mxu0 0.0
    %433 = vmatprep.subr.mxu0 0.0
    %434 = vmatpush1.msra.mxu0 0.0
    %435 = vmatprep.subr.mxu0 0.0
    %436 = vmatpush1.msra.mxu0 0.0
    %437 = vmatprep.subr.mxu0 0.0
    %438 = vmatpush1.msra.mxu0 0.0
    %439 = vmatprep.subr.mxu0 0.0
    %440 = vmatpush1.msra.mxu0 0.0
    %441 = vmatprep.subr.mxu0 0.0
    %442 = vmatpush1.msra.mxu0 0.0
    %443 = vmatprep.subr.mxu0 0.0
    %444 = vmatpush1.msra.mxu0 0.0
    %445 = vmatprep.subr.mxu0 0.0
    %446 = vmatpush1.msra.mxu0 0.0
    %447 = vmatprep.subr.mxu0 0.0
    %448 = vmatpush1.msra.mxu0 0.0
    %449 = vmatprep.subr.mxu0 0.0
    %450 = vmatpush1.msra.mxu0 0.0
    %451 = vmatprep.subr.mxu0 0.0
    %452 = vmatpush1.msra.mxu0 0.0
    %453 = vmatprep.subr.mxu0 0.0
    %454 = vmatpush1.msra.mxu0 0.0
    %455 = vmatprep.mubr.f32.mxu0 0.0
    %456 = vmatmul.mubr.f32.gmra.mrb[0].mxu0 %v389
    %v457 = vpop.f32.mrb[0].mxu0
    %v458 = vadd.f32 %v387, %v457
    %v459 = vpop.f32.mrb[0].mxu0
    %460 = vdwg.mxu0
    %v461 = vadd.f32 %v381, %v458
    %v462 = vld [vmem:[%s1] sm:$0xff]
    %v463 = vld [vmem:[%s2] sm:$0xff]
    %v464 = vlaneseq
    %v465 = vshrl.u32 %v464, 7
    %v466 = vsub.s32 5, %v465
    %v467 = vrot.slane %v24, %v466
    %v469 = vsel %vm310, %v463, 0
    %471 = vmatprep.subr.mxu0 0.0
    %472 = vmatpush1.msra.mxu0 %v28
    %473 = vmatprep.subr.mxu0 0.0
    %474 = vmatpush1.msra.mxu0 %v29
    %475 = vmatprep.subr.mxu0 0.0
    %476 = vmatpush1.msra.mxu0 0.0
    %477 = vmatprep.subr.mxu0 0.0
    %478 = vmatpush1.msra.mxu0 0.0
    %479 = vmatprep.subr.mxu0 0.0
    %480 = vmatpush1.msra.mxu0 0.0
    %481 = vmatprep.subr.mxu0 0.0
    %482 = vmatpush1.msra.mxu0 0.0
    %483 = vmatprep.subr.mxu0 0.0
    %484 = vmatpush1.msra.mxu0 0.0
    %485 = vmatprep.subr.mxu0 0.0
    %486 = vmatpush1.msra.mxu0 0.0
    %487 = vmatprep.subr.mxu0 0.0
    %488 = vmatpush1.msra.mxu0 0.0
    %489 = vmatprep.subr.mxu0 0.0
    %490 = vmatpush1.msra.mxu0 0.0
    %491 = vmatprep.subr.mxu0 0.0
    %492 = vmatpush1.msra.mxu0 0.0
    %493 = vmatprep.subr.mxu0 0.0
    %494 = vmatpush1.msra.mxu0 0.0
    %495 = vmatprep.subr.mxu0 0.0
    %496 = vmatpush1.msra.mxu0 0.0
    %497 = vmatprep.subr.mxu0 0.0
    %498 = vmatpush1.msra.mxu0 0.0
    %499 = vmatprep.subr.mxu0 0.0
    %500 = vmatpush1.msra.mxu0 0.0
    %501 = vmatprep.subr.mxu0 0.0
    %502 = vmatpush1.msra.mxu0 0.0
    %503 = vmatprep.subr.mxu0 0.0
    %504 = vmatpush1.msra.mxu0 0.0
    %505 = vmatprep.subr.mxu0 0.0
    %506 = vmatpush1.msra.mxu0 0.0
    %507 = vmatprep.subr.mxu0 0.0
    %508 = vmatpush1.msra.mxu0 0.0
    %509 = vmatprep.subr.mxu0 0.0
    %510 = vmatpush1.msra.mxu0 0.0
    %511 = vmatprep.subr.mxu0 0.0
    %512 = vmatpush1.msra.mxu0 0.0
    %513 = vmatprep.subr.mxu0 0.0
    %514 = vmatpush1.msra.mxu0 0.0
    %515 = vmatprep.subr.mxu0 0.0
    %516 = vmatpush1.msra.mxu0 0.0
    %517 = vmatprep.subr.mxu0 0.0
    %518 = vmatpush1.msra.mxu0 0.0
    %519 = vmatprep.subr.mxu0 0.0
    %520 = vmatpush1.msra.mxu0 0.0
    %521 = vmatprep.subr.mxu0 0.0
    %522 = vmatpush1.msra.mxu0 0.0
    %523 = vmatprep.subr.mxu0 0.0
    %524 = vmatpush1.msra.mxu0 0.0
    %525 = vmatprep.subr.mxu0 0.0
    %526 = vmatpush1.msra.mxu0 0.0
    %527 = vmatprep.subr.mxu0 0.0
    %528 = vmatpush1.msra.mxu0 0.0
    %529 = vmatprep.subr.mxu0 0.0
    %530 = vmatpush1.msra.mxu0 0.0
    %531 = vmatprep.subr.mxu0 0.0
    %532 = vmatpush1.msra.mxu0 0.0
    %533 = vmatprep.subr.mxu0 0.0
    %534 = vmatpush1.msra.mxu0 0.0
    %535 = vmatprep.mubr.f32.mxu0 0.0
    %536 = vmatmul.mubr.f32.gmra.mrb[0].mxu0 %v469
    %v537 = vpop.f32.mrb[0].mxu0
    %v538 = vadd.f32 %v467, %v537
    %v539 = vpop.f32.mrb[0].mxu0
    %540 = vdwg.mxu0
    %vm541 = vcmask 64512
    %v543 = vsel %vm541, %v462, 0
    %545 = vmatprep.subr.mxu0 0.0
    %546 = vmatpush1.msra.mxu0 %v538
    %547 = vmatprep.subr.mxu0 0.0
    %548 = vmatpush1.msra.mxu0 0.0
    %549 = vmatprep.subr.mxu0 0.0
    %550 = vmatpush1.msra.mxu0 0.0
    %551 = vmatprep.subr.mxu0 0.0
    %552 = vmatpush1.msra.mxu0 0.0
    %553 = vmatprep.subr.mxu0 0.0
    %554 = vmatpush1.msra.mxu0 0.0
    %555 = vmatprep.subr.mxu0 0.0
    %556 = vmatpush1.msra.mxu0 0.0
    %557 = vmatprep.subr.mxu0 0.0
    %558 = vmatpush1.msra.mxu0 0.0
    %559 = vmatprep.subr.mxu0 0.0
    %560 = vmatpush1.msra.mxu0 0.0
    %561 = vmatprep.subr.mxu0 0.0
    %562 = vmatpush1.msra.mxu0 0.0
    %563 = vmatprep.subr.mxu0 0.0
    %564 = vmatpush1.msra.mxu0 0.0
    %565 = vmatprep.subr.mxu0 0.0
    %566 = vmatpush1.msra.mxu0 0.0
    %567 = vmatprep.subr.mxu0 0.0
    %568 = vmatpush1.msra.mxu0 0.0
    %569 = vmatprep.subr.mxu0 0.0
    %570 = vmatpush1.msra.mxu0 0.0
    %571 = vmatprep.subr.mxu0 0.0
    %572 = vmatpush1.msra.mxu0 0.0
    %573 = vmatprep.subr.mxu0 0.0
    %574 = vmatpush1.msra.mxu0 0.0
    %575 = vmatprep.subr.mxu0 0.0
    %576 = vmatpush1.msra.mxu0 0.0
    %577 = vmatprep.subr.mxu0 0.0
    %578 = vmatpush1.msra.mxu0 0.0
    %579 = vmatprep.subr.mxu0 0.0
    %580 = vmatpush1.msra.mxu0 0.0
    %581 = vmatprep.subr.mxu0 0.0
    %582 = vmatpush1.msra.mxu0 0.0
    %583 = vmatprep.subr.mxu0 0.0
    %584 = vmatpush1.msra.mxu0 0.0
    %585 = vmatprep.subr.mxu0 0.0
    %586 = vmatpush1.msra.mxu0 0.0
    %587 = vmatprep.subr.mxu0 0.0
    %588 = vmatpush1.msra.mxu0 0.0
    %589 = vmatprep.subr.mxu0 0.0
    %590 = vmatpush1.msra.mxu0 0.0
    %591 = vmatprep.subr.mxu0 0.0
    %592 = vmatpush1.msra.mxu0 0.0
    %593 = vmatprep.subr.mxu0 0.0
    %594 = vmatpush1.msra.mxu0 0.0
    %595 = vmatprep.subr.mxu0 0.0
    %596 = vmatpush1.msra.mxu0 0.0
    %597 = vmatprep.subr.mxu0 0.0
    %598 = vmatpush1.msra.mxu0 0.0
    %599 = vmatprep.subr.mxu0 0.0
    %600 = vmatpush1.msra.mxu0 0.0
    %601 = vmatprep.subr.mxu0 0.0
    %602 = vmatpush1.msra.mxu0 0.0
    %603 = vmatprep.subr.mxu0 0.0
    %604 = vmatpush1.msra.mxu0 0.0
    %605 = vmatprep.subr.mxu0 0.0
    %606 = vmatpush1.msra.mxu0 0.0
    %607 = vmatprep.subr.mxu0 0.0
    %608 = vmatpush1.msra.mxu0 0.0
    %609 = vmatprep.mubr.f32.mxu0 0.0
    %610 = vmatmul.mubr.f32.gmra.mrb[0].mxu0 %v543
    %v611 = vpop.f32.mrb[0].mxu0
    %v612 = vadd.f32 0.0, %v611
    %v613 = vpop.f32.mrb[0].mxu0
    %614 = vdwg.mxu0
    %v615 = vmul.f32 %v612, 0.125
    %v616 = vadd.f32 %v461, %v615
    %v617 = vmul.f32 %v616, 0.33333334
    %v618 = vmax.f32 %v617, 0.0
    %v620 = vsel %vm310, %v618, 0
    %622 = vmatprep.subr.mxu0 0.0
    %623 = vmatpush1.msra.mxu0 %v28
    %624 = vmatprep.subr.mxu0 0.0
    %625 = vmatpush1.msra.mxu0 %v29
    %626 = vmatprep.subr.mxu0 0.0
    %627 = vmatpush1.msra.mxu0 0.0
    %628 = vmatprep.subr.mxu0 0.0
    %629 = vmatpush1.msra.mxu0 0.0
    %630 = vmatprep.subr.mxu0 0.0
    %631 = vmatpush1.msra.mxu0 0.0
    %632 = vmatprep.subr.mxu0 0.0
    %633 = vmatpush1.msra.mxu0 0.0
    %634 = vmatprep.subr.mxu0 0.0
    %635 = vmatpush1.msra.mxu0 0.0
    %636 = vmatprep.subr.mxu0 0.0
    %637 = vmatpush1.msra.mxu0 0.0
    %638 = vmatprep.subr.mxu0 0.0
    %639 = vmatpush1.msra.mxu0 0.0
    %640 = vmatprep.subr.mxu0 0.0
    %641 = vmatpush1.msra.mxu0 0.0
    %642 = vmatprep.subr.mxu0 0.0
    %643 = vmatpush1.msra.mxu0 0.0
    %644 = vmatprep.subr.mxu0 0.0
    %645 = vmatpush1.msra.mxu0 0.0
    %646 = vmatprep.subr.mxu0 0.0
    %647 = vmatpush1.msra.mxu0 0.0
    %648 = vmatprep.subr.mxu0 0.0
    %649 = vmatpush1.msra.mxu0 0.0
    %650 = vmatprep.subr.mxu0 0.0
    %651 = vmatpush1.msra.mxu0 0.0
    %652 = vmatprep.subr.mxu0 0.0
    %653 = vmatpush1.msra.mxu0 0.0
    %654 = vmatprep.subr.mxu0 0.0
    %655 = vmatpush1.msra.mxu0 0.0
    %656 = vmatprep.subr.mxu0 0.0
    %657 = vmatpush1.msra.mxu0 0.0
    %658 = vmatprep.subr.mxu0 0.0
    %659 = vmatpush1.msra.mxu0 0.0
    %660 = vmatprep.subr.mxu0 0.0
    %661 = vmatpush1.msra.mxu0 0.0
    %662 = vmatprep.subr.mxu0 0.0
    %663 = vmatpush1.msra.mxu0 0.0
    %664 = vmatprep.subr.mxu0 0.0
    %665 = vmatpush1.msra.mxu0 0.0
    %666 = vmatprep.subr.mxu0 0.0
    %667 = vmatpush1.msra.mxu0 0.0
    %668 = vmatprep.subr.mxu0 0.0
    %669 = vmatpush1.msra.mxu0 0.0
    %670 = vmatprep.subr.mxu0 0.0
    %671 = vmatpush1.msra.mxu0 0.0
    %672 = vmatprep.subr.mxu0 0.0
    %673 = vmatpush1.msra.mxu0 0.0
    %674 = vmatprep.subr.mxu0 0.0
    %675 = vmatpush1.msra.mxu0 0.0
    %676 = vmatprep.subr.mxu0 0.0
    %677 = vmatpush1.msra.mxu0 0.0
    %678 = vmatprep.subr.mxu0 0.0
    %679 = vmatpush1.msra.mxu0 0.0
    %680 = vmatprep.subr.mxu0 0.0
    %681 = vmatpush1.msra.mxu0 0.0
    %682 = vmatprep.subr.mxu0 0.0
    %683 = vmatpush1.msra.mxu0 0.0
    %684 = vmatprep.subr.mxu0 0.0
    %685 = vmatpush1.msra.mxu0 0.0
    %686 = vmatprep.mubr.f32.mxu0 0.0
    %687 = vmatmul.mubr.f32.gmra.mrb[0].mxu0 %v620
    %v688 = vpop.f32.mrb[0].mxu0
    %v689 = vadd.f32 %v467, %v688
    %v690 = vpop.f32.mrb[0].mxu0
    %691 = vdwg.mxu0
    %692 = vmatprep.subr.mxu0 0.0
    %693 = vmatpush1.msra.mxu0 %v689
    %694 = vmatprep.subr.mxu0 0.0
    %695 = vmatpush1.msra.mxu0 0.0
    %696 = vmatprep.subr.mxu0 0.0
    %697 = vmatpush1.msra.mxu0 0.0
    %698 = vmatprep.subr.mxu0 0.0
    %699 = vmatpush1.msra.mxu0 0.0
    %700 = vmatprep.subr.mxu0 0.0
    %701 = vmatpush1.msra.mxu0 0.0
    %702 = vmatprep.subr.mxu0 0.0
    %703 = vmatpush1.msra.mxu0 0.0
    %704 = vmatprep.subr.mxu0 0.0
    %705 = vmatpush1.msra.mxu0 0.0
    %706 = vmatprep.subr.mxu0 0.0
    %707 = vmatpush1.msra.mxu0 0.0
    %708 = vmatprep.subr.mxu0 0.0
    %709 = vmatpush1.msra.mxu0 0.0
    %710 = vmatprep.subr.mxu0 0.0
    %711 = vmatpush1.msra.mxu0 0.0
    %712 = vmatprep.subr.mxu0 0.0
    %713 = vmatpush1.msra.mxu0 0.0
    %714 = vmatprep.subr.mxu0 0.0
    %715 = vmatpush1.msra.mxu0 0.0
    %716 = vmatprep.subr.mxu0 0.0
    %717 = vmatpush1.msra.mxu0 0.0
    %718 = vmatprep.subr.mxu0 0.0
    %719 = vmatpush1.msra.mxu0 0.0
    %720 = vmatprep.subr.mxu0 0.0
    %721 = vmatpush1.msra.mxu0 0.0
    %722 = vmatprep.subr.mxu0 0.0
    %723 = vmatpush1.msra.mxu0 0.0
    %724 = vmatprep.subr.mxu0 0.0
    %725 = vmatpush1.msra.mxu0 0.0
    %726 = vmatprep.subr.mxu0 0.0
    %727 = vmatpush1.msra.mxu0 0.0
    %728 = vmatprep.subr.mxu0 0.0
    %729 = vmatpush1.msra.mxu0 0.0
    %730 = vmatprep.subr.mxu0 0.0
    %731 = vmatpush1.msra.mxu0 0.0
    %732 = vmatprep.subr.mxu0 0.0
    %733 = vmatpush1.msra.mxu0 0.0
    %734 = vmatprep.subr.mxu0 0.0
    %735 = vmatpush1.msra.mxu0 0.0
    %736 = vmatprep.subr.mxu0 0.0
    %737 = vmatpush1.msra.mxu0 0.0
    %738 = vmatprep.subr.mxu0 0.0
    %739 = vmatpush1.msra.mxu0 0.0
    %740 = vmatprep.subr.mxu0 0.0
    %741 = vmatpush1.msra.mxu0 0.0
    %742 = vmatprep.subr.mxu0 0.0
    %743 = vmatpush1.msra.mxu0 0.0
    %744 = vmatprep.subr.mxu0 0.0
    %745 = vmatpush1.msra.mxu0 0.0
    %746 = vmatprep.subr.mxu0 0.0
    %747 = vmatpush1.msra.mxu0 0.0
    %748 = vmatprep.subr.mxu0 0.0
    %749 = vmatpush1.msra.mxu0 0.0
    %750 = vmatprep.subr.mxu0 0.0
    %751 = vmatpush1.msra.mxu0 0.0
    %752 = vmatprep.subr.mxu0 0.0
    %753 = vmatpush1.msra.mxu0 0.0
    %754 = vmatprep.subr.mxu0 0.0
    %755 = vmatpush1.msra.mxu0 0.0
    %756 = vmatprep.mubr.f32.mxu0 0.0
    %757 = vmatmul.mubr.f32.gmra.mrb[0].mxu0 %v543
    %v758 = vpop.f32.mrb[0].mxu0
    %v759 = vadd.f32 0.0, %v758
    %v760 = vpop.f32.mrb[0].mxu0
    %761 = vdwg.mxu0
    %v762 = vmul.f32 %v759, 0.125
    %v763 = vadd.f32 %v461, %v762
    %v764 = vmul.f32 %v763, 0.33333334
    %v765 = vmax.f32 %v764, 0.0
    %v767 = vsel %vm310, %v765, 0
    %769 = vmatprep.subr.mxu0 0.0
    %770 = vmatpush1.msra.mxu0 %v28
    %771 = vmatprep.subr.mxu0 0.0
    %772 = vmatpush1.msra.mxu0 %v29
    %773 = vmatprep.subr.mxu0 0.0
    %774 = vmatpush1.msra.mxu0 0.0
    %775 = vmatprep.subr.mxu0 0.0
    %776 = vmatpush1.msra.mxu0 0.0
    %777 = vmatprep.subr.mxu0 0.0
    %778 = vmatpush1.msra.mxu0 0.0
    %779 = vmatprep.subr.mxu0 0.0
    %780 = vmatpush1.msra.mxu0 0.0
    %781 = vmatprep.subr.mxu0 0.0
    %782 = vmatpush1.msra.mxu0 0.0
    %783 = vmatprep.subr.mxu0 0.0
    %784 = vmatpush1.msra.mxu0 0.0
    %785 = vmatprep.subr.mxu0 0.0
    %786 = vmatpush1.msra.mxu0 0.0
    %787 = vmatprep.subr.mxu0 0.0
    %788 = vmatpush1.msra.mxu0 0.0
    %789 = vmatprep.subr.mxu0 0.0
    %790 = vmatpush1.msra.mxu0 0.0
    %791 = vmatprep.subr.mxu0 0.0
    %792 = vmatpush1.msra.mxu0 0.0
    %793 = vmatprep.subr.mxu0 0.0
    %794 = vmatpush1.msra.mxu0 0.0
    %795 = vmatprep.subr.mxu0 0.0
    %796 = vmatpush1.msra.mxu0 0.0
    %797 = vmatprep.subr.mxu0 0.0
    %798 = vmatpush1.msra.mxu0 0.0
    %799 = vmatprep.subr.mxu0 0.0
    %800 = vmatpush1.msra.mxu0 0.0
    %801 = vmatprep.subr.mxu0 0.0
    %802 = vmatpush1.msra.mxu0 0.0
    %803 = vmatprep.subr.mxu0 0.0
    %804 = vmatpush1.msra.mxu0 0.0
    %805 = vmatprep.subr.mxu0 0.0
    %806 = vmatpush1.msra.mxu0 0.0
    %807 = vmatprep.subr.mxu0 0.0
    %808 = vmatpush1.msra.mxu0 0.0
    %809 = vmatprep.subr.mxu0 0.0
    %810 = vmatpush1.msra.mxu0 0.0
    %811 = vmatprep.subr.mxu0 0.0
    %812 = vmatpush1.msra.mxu0 0.0
    %813 = vmatprep.subr.mxu0 0.0
    %814 = vmatpush1.msra.mxu0 0.0
    %815 = vmatprep.subr.mxu0 0.0
    %816 = vmatpush1.msra.mxu0 0.0
    %817 = vmatprep.subr.mxu0 0.0
    %818 = vmatpush1.msra.mxu0 0.0
    %819 = vmatprep.subr.mxu0 0.0
    %820 = vmatpush1.msra.mxu0 0.0
    %821 = vmatprep.subr.mxu0 0.0
    %822 = vmatpush1.msra.mxu0 0.0
    %823 = vmatprep.subr.mxu0 0.0
    %824 = vmatpush1.msra.mxu0 0.0
    %825 = vmatprep.subr.mxu0 0.0
    %826 = vmatpush1.msra.mxu0 0.0
    %827 = vmatprep.subr.mxu0 0.0
    %828 = vmatpush1.msra.mxu0 0.0
    %829 = vmatprep.subr.mxu0 0.0
    %830 = vmatpush1.msra.mxu0 0.0
    %831 = vmatprep.subr.mxu0 0.0
    %832 = vmatpush1.msra.mxu0 0.0
    %833 = vmatprep.mubr.f32.mxu0 0.0
    %834 = vmatmul.mubr.f32.gmra.mrb[0].mxu0 %v767
    %v835 = vpop.f32.mrb[0].mxu0
    %v836 = vadd.f32 %v467, %v835
    %v837 = vpop.f32.mrb[0].mxu0
    %838 = vdwg.mxu0
    %839 = vmatprep.subr.mxu0 0.0
    %840 = vmatpush1.msra.mxu0 %v836
    %841 = vmatprep.subr.mxu0 0.0
    %842 = vmatpush1.msra.mxu0 0.0
    %843 = vmatprep.subr.mxu0 0.0
    %844 = vmatpush1.msra.mxu0 0.0
    %845 = vmatprep.subr.mxu0 0.0
    %846 = vmatpush1.msra.mxu0 0.0
    %847 = vmatprep.subr.mxu0 0.0
    %848 = vmatpush1.msra.mxu0 0.0
    %849 = vmatprep.subr.mxu0 0.0
    %850 = vmatpush1.msra.mxu0 0.0
    %851 = vmatprep.subr.mxu0 0.0
    %852 = vmatpush1.msra.mxu0 0.0
    %853 = vmatprep.subr.mxu0 0.0
    %854 = vmatpush1.msra.mxu0 0.0
    %855 = vmatprep.subr.mxu0 0.0
    %856 = vmatpush1.msra.mxu0 0.0
    %857 = vmatprep.subr.mxu0 0.0
    %858 = vmatpush1.msra.mxu0 0.0
    %859 = vmatprep.subr.mxu0 0.0
    %860 = vmatpush1.msra.mxu0 0.0
    %861 = vmatprep.subr.mxu0 0.0
    %862 = vmatpush1.msra.mxu0 0.0
    %863 = vmatprep.subr.mxu0 0.0
    %864 = vmatpush1.msra.mxu0 0.0
    %865 = vmatprep.subr.mxu0 0.0
    %866 = vmatpush1.msra.mxu0 0.0
    %867 = vmatprep.subr.mxu0 0.0
    %868 = vmatpush1.msra.mxu0 0.0
    %869 = vmatprep.subr.mxu0 0.0
    %870 = vmatpush1.msra.mxu0 0.0
    %871 = vmatprep.subr.mxu0 0.0
    %872 = vmatpush1.msra.mxu0 0.0
    %873 = vmatprep.subr.mxu0 0.0
    %874 = vmatpush1.msra.mxu0 0.0
    %875 = vmatprep.subr.mxu0 0.0
    %876 = vmatpush1.msra.mxu0 0.0
    %877 = vmatprep.subr.mxu0 0.0
    %878 = vmatpush1.msra.mxu0 0.0
    %879 = vmatprep.subr.mxu0 0.0
    %880 = vmatpush1.msra.mxu0 0.0
    %881 = vmatprep.subr.mxu0 0.0
    %882 = vmatpush1.msra.mxu0 0.0
    %883 = vmatprep.subr.mxu0 0.0
    %884 = vmatpush1.msra.mxu0 0.0
    %885 = vmatprep.subr.mxu0 0.0
    %886 = vmatpush1.msra.mxu0 0.0
    %887 = vmatprep.subr.mxu0 0.0
    %888 = vmatpush1.msra.mxu0 0.0
    %889 = vmatprep.subr.mxu0 0.0
    %890 = vmatpush1.msra.mxu0 0.0
    %891 = vmatprep.subr.mxu0 0.0
    %892 = vmatpush1.msra.mxu0 0.0
    %893 = vmatprep.subr.mxu0 0.0
    %894 = vmatpush1.msra.mxu0 0.0
    %895 = vmatprep.subr.mxu0 0.0
    %896 = vmatpush1.msra.mxu0 0.0
    %897 = vmatprep.subr.mxu0 0.0
    %898 = vmatpush1.msra.mxu0 0.0
    %899 = vmatprep.subr.mxu0 0.0
    %900 = vmatpush1.msra.mxu0 0.0
    %901 = vmatprep.subr.mxu0 0.0
    %902 = vmatpush1.msra.mxu0 0.0
    %903 = vmatprep.mubr.f32.mxu0 0.0
    %904 = vmatmul.mubr.f32.gmra.mrb[0].mxu0 %v543
    %v905 = vpop.f32.mrb[0].mxu0
    %v906 = vadd.f32 0.0, %v905
    %v907 = vpop.f32.mrb[0].mxu0
    %908 = vdwg.mxu0
    %v909 = vmul.f32 %v906, 0.125
    %v910 = vadd.f32 %v461, %v909
    %v911 = vmul.f32 %v910, 0.33333334
    %v912 = vmax.f32 %v911, 0.0
    %v913 = vsel %vm310, %v912, 0.0
    %v914 = vrot.slane %v913, 4
    %v915 = vadd.f32 %v913, %v914
    %v916 = vrot.slane %v915, 2
    %v917 = vadd.f32 %v915, %v916
    %v918 = vrot.slane %v917, 1
    %v919 = vadd.f32 %v917, %v918
    %v920 = vmul.f32 %v919, 0.125
    %v921 = vld [vmem:[%s3] sm:$0xf]
    %v923 = vsel %vm541, %v921, 0
    %925 = vmatprep.subr.mxu0 0.0
    %926 = vmatpush1.msra.mxu0 %v912
    %927 = vmatprep.subr.mxu0 0.0
    %928 = vmatpush1.msra.mxu0 0.0
    %929 = vmatprep.subr.mxu0 0.0
    %930 = vmatpush1.msra.mxu0 0.0
    %931 = vmatprep.subr.mxu0 0.0
    %932 = vmatpush1.msra.mxu0 0.0
    %933 = vmatprep.subr.mxu0 0.0
    %934 = vmatpush1.msra.mxu0 0.0
    %935 = vmatprep.subr.mxu0 0.0
    %936 = vmatpush1.msra.mxu0 0.0
    %937 = vmatprep.subr.mxu0 0.0
    %938 = vmatpush1.msra.mxu0 0.0
    %939 = vmatprep.subr.mxu0 0.0
    %940 = vmatpush1.msra.mxu0 0.0
    %941 = vmatprep.subr.mxu0 0.0
    %942 = vmatpush1.msra.mxu0 0.0
    %943 = vmatprep.subr.mxu0 0.0
    %944 = vmatpush1.msra.mxu0 0.0
    %945 = vmatprep.subr.mxu0 0.0
    %946 = vmatpush1.msra.mxu0 0.0
    %947 = vmatprep.subr.mxu0 0.0
    %948 = vmatpush1.msra.mxu0 0.0
    %949 = vmatprep.subr.mxu0 0.0
    %950 = vmatpush1.msra.mxu0 0.0
    %951 = vmatprep.subr.mxu0 0.0
    %952 = vmatpush1.msra.mxu0 0.0
    %953 = vmatprep.subr.mxu0 0.0
    %954 = vmatpush1.msra.mxu0 0.0
    %955 = vmatprep.subr.mxu0 0.0
    %956 = vmatpush1.msra.mxu0 0.0
    %957 = vmatprep.subr.mxu0 0.0
    %958 = vmatpush1.msra.mxu0 0.0
    %959 = vmatprep.subr.mxu0 0.0
    %960 = vmatpush1.msra.mxu0 0.0
    %961 = vmatprep.subr.mxu0 0.0
    %962 = vmatpush1.msra.mxu0 0.0
    %963 = vmatprep.subr.mxu0 0.0
    %964 = vmatpush1.msra.mxu0 0.0
    %965 = vmatprep.subr.mxu0 0.0
    %966 = vmatpush1.msra.mxu0 0.0
    %967 = vmatprep.subr.mxu0 0.0
    %968 = vmatpush1.msra.mxu0 0.0
    %969 = vmatprep.subr.mxu0 0.0
    %970 = vmatpush1.msra.mxu0 0.0
    %971 = vmatprep.subr.mxu0 0.0
    %972 = vmatpush1.msra.mxu0 0.0
    %973 = vmatprep.subr.mxu0 0.0
    %974 = vmatpush1.msra.mxu0 0.0
    %975 = vmatprep.subr.mxu0 0.0
    %976 = vmatpush1.msra.mxu0 0.0
    %977 = vmatprep.subr.mxu0 0.0
    %978 = vmatpush1.msra.mxu0 0.0
    %979 = vmatprep.subr.mxu0 0.0
    %980 = vmatpush1.msra.mxu0 0.0
    %981 = vmatprep.subr.mxu0 0.0
    %982 = vmatpush1.msra.mxu0 0.0
    %983 = vmatprep.subr.mxu0 0.0
    %984 = vmatpush1.msra.mxu0 0.0
    %985 = vmatprep.subr.mxu0 0.0
    %986 = vmatpush1.msra.mxu0 0.0
    %987 = vmatprep.subr.mxu0 0.0
    %988 = vmatpush1.msra.mxu0 0.0
    %989 = vmatprep.mubr.f32.mxu0 0.0
    %990 = vmatmul.mubr.f32.gmra.mrb[0].mxu0 %v923
    %v991 = vpop.f32.mrb[0].mxu0
    %v992 = vadd.f32 0.0, %v991
    %v993 = vpop.f32.mrb[0].mxu0
    %994 = vdwg.mxu0
    %v996 = vrot.slane %v24, 7
    %v999 = vsel %vm310, %v920, 0
    %1001 = vmatprep.subr.mxu0 0.0
    %1002 = vmatpush1.msra.mxu0 %v32
    %1003 = vmatprep.subr.mxu0 0.0
    %1004 = vmatpush1.msra.mxu0 %v33
    %1005 = vmatprep.subr.mxu0 0.0
    %1006 = vmatpush1.msra.mxu0 0.0
    %1007 = vmatprep.subr.mxu0 0.0
    %1008 = vmatpush1.msra.mxu0 0.0
    %1009 = vmatprep.subr.mxu0 0.0
    %1010 = vmatpush1.msra.mxu0 0.0
    %1011 = vmatprep.subr.mxu0 0.0
    %1012 = vmatpush1.msra.mxu0 0.0
    %1013 = vmatprep.subr.mxu0 0.0
    %1014 = vmatpush1.msra.mxu0 0.0
    %1015 = vmatprep.subr.mxu0 0.0
    %1016 = vmatpush1.msra.mxu0 0.0
    %1017 = vmatprep.subr.mxu0 0.0
    %1018 = vmatpush1.msra.mxu0 0.0
    %1019 = vmatprep.subr.mxu0 0.0
    %1020 = vmatpush1.msra.mxu0 0.0
    %1021 = vmatprep.subr.mxu0 0.0
    %1022 = vmatpush1.msra.mxu0 0.0
    %1023 = vmatprep.subr.mxu0 0.0
    %1024 = vmatpush1.msra.mxu0 0.0
    %1025 = vmatprep.subr.mxu0 0.0
    %1026 = vmatpush1.msra.mxu0 0.0
    %1027 = vmatprep.subr.mxu0 0.0
    %1028 = vmatpush1.msra.mxu0 0.0
    %1029 = vmatprep.subr.mxu0 0.0
    %1030 = vmatpush1.msra.mxu0 0.0
    %1031 = vmatprep.subr.mxu0 0.0
    %1032 = vmatpush1.msra.mxu0 0.0
    %1033 = vmatprep.subr.mxu0 0.0
    %1034 = vmatpush1.msra.mxu0 0.0
    %1035 = vmatprep.subr.mxu0 0.0
    %1036 = vmatpush1.msra.mxu0 0.0
    %1037 = vmatprep.subr.mxu0 0.0
    %1038 = vmatpush1.msra.mxu0 0.0
    %1039 = vmatprep.subr.mxu0 0.0
    %1040 = vmatpush1.msra.mxu0 0.0
    %1041 = vmatprep.subr.mxu0 0.0
    %1042 = vmatpush1.msra.mxu0 0.0
    %1043 = vmatprep.subr.mxu0 0.0
    %1044 = vmatpush1.msra.mxu0 0.0
    %1045 = vmatprep.subr.mxu0 0.0
    %1046 = vmatpush1.msra.mxu0 0.0
    %1047 = vmatprep.subr.mxu0 0.0
    %1048 = vmatpush1.msra.mxu0 0.0
    %1049 = vmatprep.subr.mxu0 0.0
    %1050 = vmatpush1.msra.mxu0 0.0
    %1051 = vmatprep.subr.mxu0 0.0
    %1052 = vmatpush1.msra.mxu0 0.0
    %1053 = vmatprep.subr.mxu0 0.0
    %1054 = vmatpush1.msra.mxu0 0.0
    %1055 = vmatprep.subr.mxu0 0.0
    %1056 = vmatpush1.msra.mxu0 0.0
    %1057 = vmatprep.subr.mxu0 0.0
    %1058 = vmatpush1.msra.mxu0 0.0
    %1059 = vmatprep.subr.mxu0 0.0
    %1060 = vmatpush1.msra.mxu0 0.0
    %1061 = vmatprep.subr.mxu0 0.0
    %1062 = vmatpush1.msra.mxu0 0.0
    %1063 = vmatprep.subr.mxu0 0.0
    %1064 = vmatpush1.msra.mxu0 0.0
    %1065 = vmatprep.mubr.f32.mxu0 0.0
    %1066 = vmatmul.mubr.f32.gmra.mrb[0].mxu0 %v999
    %v1067 = vpop.f32.mrb[0].mxu0
    %v1068 = vadd.f32 %v996, %v1067
    %v1069 = vpop.f32.mrb[0].mxu0
    %1070 = vdwg.mxu0
    %v1071 = vmax.f32 %v1068, 0.0
    %v1072 = vlaneseq
    %v1073 = vshrl.u32 %v1072, 7
    %v1074 = vsub.s32 0, %v1073
    %v1075 = vrot.slane %v25, %v1074
    %v1077 = vsel %vm310, %v992, 0
    %1079 = vmatprep.subr.mxu0 0.0
    %1080 = vmatpush1.msra.mxu0 %v34
    %1081 = vmatprep.subr.mxu0 0.0
    %1082 = vmatpush1.msra.mxu0 %v35
    %1083 = vmatprep.subr.mxu0 0.0
    %1084 = vmatpush1.msra.mxu0 0.0
    %1085 = vmatprep.subr.mxu0 0.0
    %1086 = vmatpush1.msra.mxu0 0.0
    %1087 = vmatprep.subr.mxu0 0.0
    %1088 = vmatpush1.msra.mxu0 0.0
    %1089 = vmatprep.subr.mxu0 0.0
    %1090 = vmatpush1.msra.mxu0 0.0
    %1091 = vmatprep.subr.mxu0 0.0
    %1092 = vmatpush1.msra.mxu0 0.0
    %1093 = vmatprep.subr.mxu0 0.0
    %1094 = vmatpush1.msra.mxu0 0.0
    %1095 = vmatprep.subr.mxu0 0.0
    %1096 = vmatpush1.msra.mxu0 0.0
    %1097 = vmatprep.subr.mxu0 0.0
    %1098 = vmatpush1.msra.mxu0 0.0
    %1099 = vmatprep.subr.mxu0 0.0
    %1100 = vmatpush1.msra.mxu0 0.0
    %1101 = vmatprep.subr.mxu0 0.0
    %1102 = vmatpush1.msra.mxu0 0.0
    %1103 = vmatprep.subr.mxu0 0.0
    %1104 = vmatpush1.msra.mxu0 0.0
    %1105 = vmatprep.subr.mxu0 0.0
    %1106 = vmatpush1.msra.mxu0 0.0
    %1107 = vmatprep.subr.mxu0 0.0
    %1108 = vmatpush1.msra.mxu0 0.0
    %1109 = vmatprep.subr.mxu0 0.0
    %1110 = vmatpush1.msra.mxu0 0.0
    %1111 = vmatprep.subr.mxu0 0.0
    %1112 = vmatpush1.msra.mxu0 0.0
    %1113 = vmatprep.subr.mxu0 0.0
    %1114 = vmatpush1.msra.mxu0 0.0
    %1115 = vmatprep.subr.mxu0 0.0
    %1116 = vmatpush1.msra.mxu0 0.0
    %1117 = vmatprep.subr.mxu0 0.0
    %1118 = vmatpush1.msra.mxu0 0.0
    %1119 = vmatprep.subr.mxu0 0.0
    %1120 = vmatpush1.msra.mxu0 0.0
    %1121 = vmatprep.subr.mxu0 0.0
    %1122 = vmatpush1.msra.mxu0 0.0
    %1123 = vmatprep.subr.mxu0 0.0
    %1124 = vmatpush1.msra.mxu0 0.0
    %1125 = vmatprep.subr.mxu0 0.0
    %1126 = vmatpush1.msra.mxu0 0.0
    %1127 = vmatprep.subr.mxu0 0.0
    %1128 = vmatpush1.msra.mxu0 0.0
    %1129 = vmatprep.subr.mxu0 0.0
    %1130 = vmatpush1.msra.mxu0 0.0
    %1131 = vmatprep.subr.mxu0 0.0
    %1132 = vmatpush1.msra.mxu0 0.0
    %1133 = vmatprep.subr.mxu0 0.0
    %1134 = vmatpush1.msra.mxu0 0.0
    %1135 = vmatprep.subr.mxu0 0.0
    %1136 = vmatpush1.msra.mxu0 0.0
    %1137 = vmatprep.subr.mxu0 0.0
    %1138 = vmatpush1.msra.mxu0 0.0
    %1139 = vmatprep.subr.mxu0 0.0
    %1140 = vmatpush1.msra.mxu0 0.0
    %1141 = vmatprep.subr.mxu0 0.0
    %1142 = vmatpush1.msra.mxu0 0.0
    %1143 = vmatprep.mubr.f32.mxu0 0.0
    %1144 = vmatmul.mubr.f32.gmra.mrb[0].mxu0 %v1077
    %v1145 = vpop.f32.mrb[0].mxu0
    %v1146 = vadd.f32 %v1075, %v1145
    %v1147 = vpop.f32.mrb[0].mxu0
    %1148 = vdwg.mxu0
    %v1149 = vmax.f32 %v1146, 0.0
    %v1151 = vrot.slane %v25, 1
    %v1153 = vmul.f32 %v1071, %v1151
    %vm1154 = vcmask 122880
    %v1155 = vsel %vm1154, %v1153, 0.0
    %1156 = vadd.xlane.f32.xlu0 %v1155
    %v1157 = vpop.xlane.xlu0 %1156
    %v1158 = vrot.slane %v25, 3
    %v1160 = vadd.f32 %v1157, %v1158
    %v1161 = vlaneseq
    %v1162 = vshrl.u32 %v1161, 7
    %v1163 = vsub.s32 2, %v1162
    %v1164 = vrot.slane %v25, %v1163
    %v1165 = vmul.f32 %v1149, %v1164
    %vm1166 = vcmask 125952
    %v1167 = vsel %vm1166, %v1165, 0.0
    %1168 = vadd.xlane.f32.xlu0 %v1167
    %v1169 = vpop.xlane.xlu0 %1168
    %v1170 = vlaneseq
    %v1171 = vshrl.u32 %v1170, 7
    %v1172 = vsub.s32 0, %v1171
    %v1173 = vrot.slane %v1160, %v1172
    %v1174 = vadd.f32 %v1169, %v1173
    %v1175 = vmul.f32 %v1174, 1.442695
    %v1176 = vpow.pop %v1175
    %1178 = vset.pattern.permute.xlu0 0
    %1179 = vperm.xlu0 %1178, %v1176
    %v1180 = vpop.permute.xlu0 %1179
    %1182 = vst [vmem:[#allocation2] sm:$0xf] %v1180
    // Predicated region
    $region26: #{tpu_custom_call.1} parent=1 // pred_check
      _
    $region27: #{tpu_custom_call.1} parent=1 // pred_check_branch
      %1184 = sbr.rel (0) target = $region29
    $region28: #{tpu_custom_call.1} parent=1 // pred_region
      %s1186 = ssub.s32 64, 64
      %1187 = vsyncadd [#allocation3], %s1186
      %s1189 = sshll.u32 [#allocation2], 4
      %s1190 = int_to_ptr.vmem [resolvable:$true] %s1189
      %1192 = dma.vmem_to_hbm [thread:$0]  %s1190, 64, %s6, [#allocation3]
    $region29: #{tpu_custom_call.1} parent=1 // pred_fallthru
      _
    // Predicated region
    $region30: #{tpu_custom_call.1} parent=1 // pred_check
      _
    $region31: #{tpu_custom_call.1} parent=1 // pred_check_branch
      %1194 = sbr.rel (0) target = $region33
    $region32: #{tpu_custom_call.1} parent=1 // pred_region
      %1195 = dma.done [#allocation3], 64
    $region33: #{tpu_custom_call.1} parent=1 // pred_fallthru
      _
    %1196 = vsyncpa [#allocation3], 1

</llo_original>
